<compile_context>
chip_gen: v6e
topology: v6e:2x2x1
jax: 0.10.0
libtpu: 0.0.40
codegen_flags: <defaults>
</compile_context>

<pallas_src>
import functools

import jax
import jax.numpy as jnp
from jax.experimental import pallas as pl
from jax.experimental.pallas import tpu as pltpu

_LANE = 128


def _round_down(x, m):
    return max(m, (x // m) * m)


def _hw_params():
    """Generation-aware (vmem_limit_bytes, num_tensorcores, device_kind)."""
    kind = ""
    try:
        kind = jax.devices()[0].device_kind.lower()
    except Exception:
        pass
    vmem_phys = None
    try:
        vmem_phys = int(pltpu.get_tpu_info().vmem_capacity_bytes)
    except Exception:
        vmem_phys = None
    if not vmem_phys or vmem_phys <= 0:
        # 128 MiB on v5e/v6e; assume the smaller 64 MiB (v7x-class) otherwise.
        vmem_phys = (128 << 20) if ("v5" in kind or "v6" in kind) else (64 << 20)
    num_tc = 2 if "v7" in kind else 1
    # Leave headroom for compiler scratch / pipeline bookkeeping.
    vmem_limit = min((vmem_phys * 3) // 4, 100 << 20)
    return vmem_limit, num_tc, kind


def _connection_kernel_resident(s_ref, w_ref, o_ref):
    """Small-batch path: whole spike matrix resident, one MXU pass per N tile."""
    o_ref[...] = jnp.dot(
        s_ref[...], w_ref[...], preferred_element_type=jnp.float32
    ).astype(o_ref.dtype)


def _connection_kernel_tiled(s_ref, w_ref, o_ref, *, tk, k_rem):
    """General path: accumulate one (tm, tn) f32 output block over the K grid axis."""
    k = pl.program_id(2)

    @pl.when(k == 0)
    def _():
        o_ref[...] = jnp.zeros_like(o_ref)

    s_blk = s_ref[...]
    w_blk = w_ref[...]
    if k_rem:
        # The final K step covers a partial block; zero the padded tail of both
        # operands so undefined padding never reaches the MXU.  This replaces
        # the old host-side jnp.pad (which re-streamed all of w through HBM).
        limit = jnp.where(k == pl.num_programs(2) - 1, k_rem, tk)
        s_col = jax.lax.broadcasted_iota(jnp.int32, s_blk.shape, 1)
        w_row = jax.lax.broadcasted_iota(jnp.int32, w_blk.shape, 0)
        s_blk = jnp.where(s_col < limit, s_blk, jnp.zeros_like(s_blk))
        w_blk = jnp.where(w_row < limit, w_blk, jnp.zeros_like(w_blk))

    o_ref[...] += jnp.dot(s_blk, w_blk, preferred_element_type=jnp.float32)


def connection_forward(s, w, *, compute_dtype=jnp.bfloat16):
    """Connection.forward: downstream pre-activations = spikes @ w.

    bf16 MXU inputs, f32 accumulation / output.  For SNN timestep loops pass
    `w` already cast to `compute_dtype` (bf16) so the K*N weight cast is not
    re-done (and re-streamed through HBM) every simulation step.
    """
    B, K = s.shape
    K2, N = w.shape
    assert K == K2, "spike / weight inner dimensions do not match"

    if s.dtype != compute_dtype:
        s = s.astype(compute_dtype)  # spikes are {0,1}: exact in bf16
    if w.dtype != compute_dtype:
        # TODO(synk): cache the connection weights in bf16 (Connection state)
        # so this full-matrix cast does not run every simulation timestep.
        w = w.astype(compute_dtype)
    ibytes = jnp.dtype(compute_dtype).itemsize

    vmem_limit, num_tc, kind = _hw_params()
    headroom = vmem_limit - (4 << 20)

    # ---- Small-batch SNN fast path ------------------------------------------
    # Whole spike matrix resident in VMEM; the grid only runs over n_target and
    # each step streams a byte-budgeted, lane-dense (K, tn_s) weight slab.
    if B <= 256:
        if N <= _LANE:
            tn_s = N
        else:
            budget = 4 << 20  # ~4 MiB of weights per grid step
            tn_s = _round_down(budget // max(1, K * ibytes), _LANE)
            tn_s = max(_LANE, min(tn_s, _round_down(N, _LANE)))
            # v7x: keep at least 2 steps per TensorCore so both TCs get work.
            if num_tc > 1 and N >= 2 * _LANE * num_tc:
                tn_s = min(tn_s, max(_LANE, _round_down(N // (2 * num_tc), _LANE)))
        n_steps = -(-N // tn_s)
        w_bufs = 3 if n_steps >= 3 else 2
        footprint = (
            w_bufs * K * tn_s * ibytes  # streamed weight tiles (multi-buffered)
            + 2 * B * K * ibytes        # resident spike matrix (worst case 2 bufs)
            + 2 * B * tn_s * 4          # f32 output tiles
        )
        if footprint <= headroom:
            w_spec_kwargs = {}
            if w_bufs == 3:
                # Deeper buffering hides DMA issue latency behind the tiny
                # per-step MXU work when B is small.
                w_spec_kwargs["pipeline_mode"] = pl.Buffered(3)
            cost = pl.CostEstimate(
                flops=2 * B * N * K,
                transcendentals=0,
                bytes_accessed=B * K * ibytes + K * N * ibytes + B * N * 4,
            )
            return pl.pallas_call(
                _connection_kernel_resident,
                out_shape=jax.ShapeDtypeStruct((B, N), jnp.float32),
                grid_spec=pltpu.PrefetchScalarGridSpec(
                    num_scalar_prefetch=0,
                    grid=(n_steps,),
                    in_specs=[
                        pl.BlockSpec((B, K), lambda j: (0, 0)),  # spikes resident
                        pl.BlockSpec((K, tn_s), lambda j: (0, j), **w_spec_kwargs),
                    ],
                    out_specs=pl.BlockSpec((B, tn_s), lambda j: (0, j)),
                ),
                compiler_params=pltpu.CompilerParams(
                    dimension_semantics=("parallel",),
                    vmem_limit_bytes=vmem_limit,
                ),
                cost_estimate=cost,
            )(s, w)

    # ---- General tiled path (large B / K / N, or fast-path footprint too big) -
    big_vmem = vmem_limit >= (90 << 20)            # v5e / v6e class parts
    tm_cap = 1024 if (big_vmem and "v5" not in kind) else 512
    tn_cap = 1024 if "v5" in kind else 2048        # v5e ridge is lower; don't over-grow
    tm = B if B <= tm_cap else tm_cap              # caps are multiples of 8
    tn = N if N <= tn_cap else tn_cap              # caps are multiples of 128
    tk = K if K <= 1024 else 1024
    k_rem = (K % tk) if K > tk else 0

    # VMEM safety: shrink tn if (improbably) over budget.
    while (2 * (tm * tk + tk * tn) * ibytes + 2 * tm * tn * 4) > headroom and tn > 512:
        tn = max(512, _round_down(tn // 2, _LANE))

    grid = (-(-B // tm), -(-N // tn), -(-K // tk))
    cost = pl.CostEstimate(
        flops=2 * B * N * K,
        transcendentals=0,
        bytes_accessed=grid[1] * B * K * ibytes + grid[0] * K * N * ibytes + B * N * 4,
    )
    kernel = functools.partial(_connection_kernel_tiled, tk=tk, k_rem=k_rem)
    return pl.pallas_call(
        kernel,
        out_shape=jax.ShapeDtypeStruct((B, N), jnp.float32),
        grid_spec=pltpu.PrefetchScalarGridSpec(
            num_scalar_prefetch=0,
            grid=grid,
            in_specs=[
                pl.BlockSpec((tm, tk), lambda i, j, k: (i, k)),
                pl.BlockSpec((tk, tn), lambda i, j, k: (k, j)),
            ],
            # Output block is K-invariant -> stays resident and is accumulated
            # into directly (no separate f32 accumulator scratch).
            out_specs=pl.BlockSpec((tm, tn), lambda i, j, k: (i, j)),
        ),
        compiler_params=pltpu.CompilerParams(
            dimension_semantics=("parallel", "parallel", "arbitrary"),
            vmem_limit_bytes=vmem_limit,
        ),
        cost_estimate=cost,
    )(s, w)


def sample_weights(key, input_size, output_size):
    """Connection.sample_weights: normal(mean=0.5, std=1.0, size=(in, out))."""
    return 0.5 + 1.0 * jax.random.normal(
        key, (input_size, output_size), dtype=jnp.float32
    )


# TODO(synk): Connection.update / update_rule (plasticity), reset_state_variables,
#             and plot_weights_histogram are training/plotting utilities with no
#             forward-pass Pallas equivalent; only forward() is implemented here.


if __name__ == "__main__":
    key = jax.random.PRNGKey(0)
    k_w, k_s, k_w2, k_s2 = jax.random.split(key, 4)

    # --- Small-batch SNN path (resident spikes, grid over n_target) -----------
    batch, n_source, n_target = 8, 256, 128
    w = sample_weights(k_w, n_source, n_target)
    w_bf16 = w.astype(jnp.bfloat16)  # hoisted cast: done once, reused per timestep
    s = (jax.random.uniform(k_s, (batch, n_source)) < 0.3).astype(jnp.float32)

    out = jax.block_until_ready(connection_forward(s, w_bf16))
    assert out.shape == (batch, n_target)
    ref_bf16 = jnp.dot(
        s.astype(jnp.bfloat16), w_bf16, preferred_element_type=jnp.float32
    )
    assert jnp.allclose(out, ref_bf16, atol=1e-3, rtol=1e-3)
    assert jnp.allclose(out, s @ w, atol=5e-1, rtol=5e-2)

    # --- General tiled path (large batch, K with a non-multiple-of-tk tail) ---
    batch2, n_source2, n_target2 = 384, 1152, 384
    w2 = sample_weights(k_w2, n_source2, n_target2).astype(jnp.bfloat16)
    s2 = (jax.random.uniform(k_s2, (batch2, n_source2)) < 0.3).astype(jnp.float32)

    out2 = jax.block_until_ready(connection_forward(s2, w2))
    assert out2.shape == (batch2, n_target2)
    ref2 = jnp.dot(
        s2.astype(jnp.bfloat16), w2, preferred_element_type=jnp.float32
    )
    assert jnp.allclose(out2, ref2, atol=1e-2, rtol=1e-2)

    print("KERNEL_OK")
</pallas_src>

<mosaic_0001>
module attributes {stable_mosaic.version = 11 : i64} {
  func.func @_connection_kernel_resident(%arg0: i32, %arg1: memref<8x256xbf16, #tpu.memory_space<vmem>>, %arg2: memref<256x128xbf16, #tpu.memory_space<vmem>>, %arg3: memref<8x128xf32, #tpu.memory_space<vmem>>) attributes {dimension_semantics = [#tpu.dimension_semantics<parallel>], iteration_bounds = array<i64: 1>, scalar_prefetch = 0 : i64, scratch_operands = 0 : i64, tpu.core_type = #tpu.core_type<tc>, window_params = [{pipeline_mode = #tpu.pipeline_mode<synchronous>, transform_indices = @transform_0, window_bounds = array<i64: 8, 256>}, {transform_indices = @transform_1, window_bounds = array<i64: 256, 128>}, {transform_indices = @transform_2, window_bounds = array<i64: 8, 128>}]} {
    %c0 = arith.constant 0 : index
    %c0_0 = arith.constant 0 : index
    %0 = vector.load %arg1[%c0, %c0_0] : memref<8x256xbf16, #tpu.memory_space<vmem>>, vector<8x256xbf16>
    %c0_1 = arith.constant 0 : index
    %c0_2 = arith.constant 0 : index
    %1 = vector.load %arg2[%c0_1, %c0_2] : memref<256x128xbf16, #tpu.memory_space<vmem>>, vector<256x128xbf16>
    %cst = arith.constant dense<0.000000e+00> : vector<8x128xf32>
    %2 = tpu.matmul %0, %1, %cst {dimension_numbers = #tpu.dot_dimension_numbers<[1], [0], [0], [1], [0, 0, 1, 1], [], []>} : vector<8x256xbf16>, vector<256x128xbf16>, vector<8x128xf32> -> vector<8x128xf32>
    %c0_3 = arith.constant 0 : index
    %c0_4 = arith.constant 0 : index
    %3 = vector.load %arg3[%c0_3, %c0_4] : memref<8x128xf32, #tpu.memory_space<vmem>>, vector<8x128xf32>
    tpu.vector_store %arg3[%c0_3, %c0_4], %2 {strides = array<i32>} : memref<8x128xf32, #tpu.memory_space<vmem>>, vector<8x128xf32>,
    return
  }
  func.func @transform_0(%arg0: i32) -> (i32, i32) {
    %c0_i32 = arith.constant 0 : i32
    %c0_i32_0 = arith.constant 0 : i32
    %c0_i32_1 = arith.constant 0 : i32
    return %c0_i32, %c0_i32_0 : i32, i32
  }
  func.func @transform_1(%arg0: i32) -> (i32, i32) {
    %c0_i32 = arith.constant 0 : i32
    %c0_i32_0 = arith.constant 0 : i32
    return %c0_i32, %arg0 : i32, i32
  }
  func.func @transform_2(%arg0: i32) -> (i32, i32) {
    %c0_i32 = arith.constant 0 : i32
    %c0_i32_0 = arith.constant 0 : i32
    return %c0_i32, %arg0 : i32, i32
  }
}

</mosaic_0001>

<llo_original>
// kernel: tpu_custom_call.1
$region0: #{tpu_custom_call.1}
  #allocation0 [shape = 'u32[]', space=smem, size = 0x4, offset = 0x4, fixed_abs, tag = 'smem constant byte address 0x4 - core index']
  #allocation1 [shape = 'u32[144,128]{1,0:T(1,128)}', space=vmem, size = 0x12000, scoped, tag = 'internal scratch']
  %s0 = inlined_call_operand.hbm [shape: bf16[8,256], index: 0, kind: input, shape index: {}]
  %s1 = inlined_call_operand.hbm [shape: bf16[256,128], index: 1, kind: input, shape index: {}]
  %s2 = inlined_call_operand.hbm [shape: f32[8,128], index: 2, kind: output, shape index: {}]
  %s3 = sld [smem:[#allocation0]]
  $region26: #{tpu_custom_call.1} parent=0
    _
  %s5 = ssub.s32 1, %s3
  %s6 = scalar_select 0, %s5, %s3
  $region1: #{tpu_custom_call.1} parent=0
    #allocation2 [shape = 'u8[4096]{0}', space=vmem, size = 0x1000, scoped, tag = 'input window, operand 0, single buffered']
    #allocation3 [shape = 's32[1]{0}', space=sflag, size = 0x4, scoped, tag = 'scoped memory for tpu_custom_call.1']
    #allocation4 [shape = 's32[1]{0}', space=sflag, size = 0x4, scoped, tag = 'scoped memory for tpu_custom_call.1']
    #allocation5 [shape = 'u8[65536]{0}', space=vmem, size = 0x10000, scoped, tag = 'input window, operand 1, single buffered']
    #allocation6 [shape = 's32[1]{0}', space=sflag, size = 0x4, scoped, tag = 'scoped memory for tpu_custom_call.1']
    #allocation7 [shape = 'u8[4096]{0}', space=vmem, size = 0x1000, scoped, tag = 'output window, operand 0, single buffered']
    %7 = vsyncpa [#allocation3], 0
    %8 = vsyncpa [#allocation6], 0
    %9 = vsyncpa [#allocation4], 0
    // Predicated region
    $region2: #{tpu_custom_call.1} parent=1 // pred_check
      _
    $region3: #{tpu_custom_call.1} parent=1 // pred_check_branch
      %11 = sbr.rel (0) target = $region5
    $region4: #{tpu_custom_call.1} parent=1 // pred_region
      %s13 = ssub.s32 128, 128
      %14 = vsyncadd [#allocation3], %s13
      %s16 = sshll.u32 [#allocation2], 4
      %s17 = int_to_ptr.vmem [resolvable:$true] %s16
      %19 = dma.hbm_to_vmem [thread:$0]  %s0, 128, %s17, [#allocation3]
    $region5: #{tpu_custom_call.1} parent=1 // pred_fallthru
      _
    // Predicated region
    $region6: #{tpu_custom_call.1} parent=1 // pred_check
      _
    $region7: #{tpu_custom_call.1} parent=1 // pred_check_branch
      %21 = sbr.rel (0) target = $region9
    $region8: #{tpu_custom_call.1} parent=1 // pred_region
      %s23 = ssub.s32 2048, 2048
      %24 = vsyncadd [#allocation6], %s23
      %s25 = sshll.u32 [#allocation5], 4
      %s26 = int_to_ptr.vmem [resolvable:$true] %s25
      %31 = dma.hbm_to_vmem [thread:$0]  %s1, 2048, %s26, [#allocation6], 64, 64, 4
    $region9: #{tpu_custom_call.1} parent=1 // pred_fallthru
      _
    // Predicated region
    $region10: #{tpu_custom_call.1} parent=1 // pred_check
      _
    $region11: #{tpu_custom_call.1} parent=1 // pred_check_branch
      %33 = sbr.rel (0) target = $region13
    $region12: #{tpu_custom_call.1} parent=1 // pred_region
      %34 = dma.done [#allocation3], 128
    $region13: #{tpu_custom_call.1} parent=1 // pred_fallthru
      _
    // Predicated region
    $region14: #{tpu_custom_call.1} parent=1 // pred_check
      _
    $region15: #{tpu_custom_call.1} parent=1 // pred_check_branch
      %36 = sbr.rel (0) target = $region17
    $region16: #{tpu_custom_call.1} parent=1 // pred_region
      %37 = dma.done [#allocation6], 2048
    $region17: #{tpu_custom_call.1} parent=1 // pred_fallthru
      _
    %v39 = vld [vmem:[#allocation2] sm:$0xff]
    %v40 = vld [vmem:[#allocation5] sm:$0xf]
    %v41 = vld [vmem:[#allocation5 + $0x4] sm:$0xf]
    %v42 = vld [vmem:[#allocation5 + $0x8] sm:$0xf]
    %v43 = vld [vmem:[#allocation5 + $0xc] sm:$0xf]
    %v44 = vld [vmem:[#allocation5 + $0x10] sm:$0xf]
    %v45 = vld [vmem:[#allocation5 + $0x14] sm:$0xf]
    %v46 = vld [vmem:[#allocation5 + $0x18] sm:$0xf]
    %v47 = vld [vmem:[#allocation5 + $0x1c] sm:$0xf]
    %v48 = vld [vmem:[#allocation5 + $0x20] sm:$0xf]
    %v49 = vld [vmem:[#allocation5 + $0x24] sm:$0xf]
    %v50 = vld [vmem:[#allocation5 + $0x28] sm:$0xf]
    %v51 = vld [vmem:[#allocation5 + $0x2c] sm:$0xf]
    %v52 = vld [vmem:[#allocation5 + $0x30] sm:$0xf]
    %v53 = vld [vmem:[#allocation5 + $0x34] sm:$0xf]
    %v54 = vld [vmem:[#allocation5 + $0x38] sm:$0xf]
    %v55 = vld [vmem:[#allocation5 + $0x3c] sm:$0xf]
    %v56 = vld [vmem:[#allocation5 + $0x40] sm:$0xf]
    %v57 = vld [vmem:[#allocation5 + $0x44] sm:$0xf]
    %v58 = vld [vmem:[#allocation5 + $0x48] sm:$0xf]
    %v59 = vld [vmem:[#allocation5 + $0x4c] sm:$0xf]
    %v60 = vld [vmem:[#allocation5 + $0x50] sm:$0xf]
    %v61 = vld [vmem:[#allocation5 + $0x54] sm:$0xf]
    %v62 = vld [vmem:[#allocation5 + $0x58] sm:$0xf]
    %v63 = vld [vmem:[#allocation5 + $0x5c] sm:$0xf]
    %v64 = vld [vmem:[#allocation5 + $0x60] sm:$0xf]
    %v65 = vld [vmem:[#allocation5 + $0x64] sm:$0xf]
    %v66 = vld [vmem:[#allocation5 + $0x68] sm:$0xf]
    %v67 = vld [vmem:[#allocation5 + $0x6c] sm:$0xf]
    %v68 = vld [vmem:[#allocation5 + $0x70] sm:$0xf]
    %v69 = vld [vmem:[#allocation5 + $0x74] sm:$0xf]
    %v70 = vld [vmem:[#allocation5 + $0x78] sm:$0xf]
    %v71 = vld [vmem:[#allocation5 + $0x7c] sm:$0xf]
    %v73 = vunpack.c.l.b16 %v39
    %v74 = vunpack.c.h.b16 %v39
    %v75 = vpack.c.b16 %v73, %v73
    %v76 = vpack.c.b16 %v74, %v74
    %v111 = vunpack.c.l.b16 %v40
    %v112 = vunpack.c.l.b16 %v41
    %v113 = vunpack.c.l.b16 %v42
    %v114 = vunpack.c.l.b16 %v43
    %v115 = vunpack.c.l.b16 %v44
    %v116 = vunpack.c.l.b16 %v45
    %v117 = vunpack.c.l.b16 %v46
    %v118 = vunpack.c.l.b16 %v47
    %v119 = vunpack.c.l.b16 %v48
    %v120 = vunpack.c.l.b16 %v49
    %v121 = vunpack.c.l.b16 %v50
    %v122 = vunpack.c.l.b16 %v51
    %v123 = vunpack.c.l.b16 %v52
    %v124 = vunpack.c.l.b16 %v53
    %v125 = vunpack.c.l.b16 %v54
    %v126 = vunpack.c.l.b16 %v55
    %v127 = vunpack.c.l.b16 %v56
    %v128 = vunpack.c.l.b16 %v57
    %v129 = vunpack.c.l.b16 %v58
    %v130 = vunpack.c.l.b16 %v59
    %v131 = vunpack.c.l.b16 %v60
    %v132 = vunpack.c.l.b16 %v61
    %v133 = vunpack.c.l.b16 %v62
    %v134 = vunpack.c.l.b16 %v63
    %v135 = vunpack.c.l.b16 %v64
    %v136 = vunpack.c.l.b16 %v65
    %v137 = vunpack.c.l.b16 %v66
    %v138 = vunpack.c.l.b16 %v67
    %v139 = vunpack.c.l.b16 %v68
    %v140 = vunpack.c.l.b16 %v69
    %v141 = vunpack.c.l.b16 %v70
    %v142 = vunpack.c.l.b16 %v71
    %v143 = vpack.c.b16 %v112, %v111
    %v144 = vpack.c.b16 %v114, %v113
    %v145 = vpack.c.b16 %v116, %v115
    %v146 = vpack.c.b16 %v118, %v117
    %v147 = vpack.c.b16 %v120, %v119
    %v148 = vpack.c.b16 %v122, %v121
    %v149 = vpack.c.b16 %v124, %v123
    %v150 = vpack.c.b16 %v126, %v125
    %v151 = vpack.c.b16 %v128, %v127
    %v152 = vpack.c.b16 %v130, %v129
    %v153 = vpack.c.b16 %v132, %v131
    %v154 = vpack.c.b16 %v134, %v133
    %v155 = vpack.c.b16 %v136, %v135
    %v156 = vpack.c.b16 %v138, %v137
    %v157 = vpack.c.b16 %v140, %v139
    %v158 = vpack.c.b16 %v142, %v141
    %175 = vmatprep.subr.bf16.mxu0 0
    %176 = vmatpush1.bf16.msra.mxu0 %v150
    %177 = vmatprep.subr.bf16.mxu0 0
    %178 = vmatpush1.bf16.msra.mxu0 %v149
    %179 = vmatprep.subr.bf16.mxu0 0
    %180 = vmatpush1.bf16.msra.mxu0 %v148
    %181 = vmatprep.subr.bf16.mxu0 0
    %182 = vmatpush1.bf16.msra.mxu0 %v147
    %183 = vmatprep.subr.bf16.mxu0 0
    %184 = vmatpush1.bf16.msra.mxu0 %v146
    %185 = vmatprep.subr.bf16.mxu0 0
    %186 = vmatpush1.bf16.msra.mxu0 %v145
    %187 = vmatprep.subr.bf16.mxu0 0
    %188 = vmatpush1.bf16.msra.mxu0 %v144
    %189 = vmatprep.subr.bf16.mxu0 0
    %190 = vmatpush1.bf16.msra.mxu0 %v143
    %191 = vmatprep.subr.bf16.mxu0 0
    %192 = vmatpush2.bf16.msra.mxu0 %v158
    %193 = vmatprep.subr.bf16.mxu0 0
    %194 = vmatpush2.bf16.msra.mxu0 %v157
    %195 = vmatprep.subr.bf16.mxu0 0
    %196 = vmatpush2.bf16.msra.mxu0 %v156
    %197 = vmatprep.subr.bf16.mxu0 0
    %198 = vmatpush2.bf16.msra.mxu0 %v155
    %199 = vmatprep.subr.bf16.mxu0 0
    %200 = vmatpush2.bf16.msra.mxu0 %v154
    %201 = vmatprep.subr.bf16.mxu0 0
    %202 = vmatpush2.bf16.msra.mxu0 %v153
    %203 = vmatprep.subr.bf16.mxu0 0
    %204 = vmatpush2.bf16.msra.mxu0 %v152
    %205 = vmatprep.subr.bf16.mxu0 0
    %206 = vmatpush2.bf16.msra.mxu0 %v151
    %207 = vmatprep.mubr.bf16.mxu0 %v76
    %208 = vmatmul.mubr.bf16.gmra.mxu0 %v75
    %v209 = vpop.f32.mrf.mxu0
    %v210 = vadd.f32 0.0, %v209
    %v211 = vpop.f32.mrf.mxu0
    %v212 = vpop.f32.mrf.mxu0
    %v213 = vpop.f32.mrf.mxu0
    %214 = vdwg.mxu0
    %215 = vst [vmem:[#allocation7] sm:$0xff] %v210
    // Predicated region
    $region18: #{tpu_custom_call.1} parent=1 // pred_check
      _
    $region19: #{tpu_custom_call.1} parent=1 // pred_check_branch
      %217 = sbr.rel (0) target = $region21
    $region20: #{tpu_custom_call.1} parent=1 // pred_region
      %s219 = ssub.s32 128, 128
      %220 = vsyncadd [#allocation4], %s219
      %s222 = sshll.u32 [#allocation7], 4
      %s223 = int_to_ptr.vmem [resolvable:$true] %s222
      %225 = dma.vmem_to_hbm [thread:$0]  %s223, 128, %s2, [#allocation4]
    $region21: #{tpu_custom_call.1} parent=1 // pred_fallthru
      _
    // Predicated region
    $region22: #{tpu_custom_call.1} parent=1 // pred_check
      _
    $region23: #{tpu_custom_call.1} parent=1 // pred_check_branch
      %227 = sbr.rel (0) target = $region25
    $region24: #{tpu_custom_call.1} parent=1 // pred_region
      %228 = dma.done [#allocation4], 128
    $region25: #{tpu_custom_call.1} parent=1 // pred_fallthru
      _
    %229 = vsyncpa [#allocation3], 1
    %230 = vsyncpa [#allocation6], 1
    %231 = vsyncpa [#allocation4], 1

</llo_original>
